<compile_context>
chip_gen: v6e
topology: v6e:2x2x1
jax: 0.10.0
libtpu: 0.0.40
codegen_flags: <defaults>
</compile_context>

<pallas_src>
import jax
import jax.numpy as jnp
from jax import lax
from jax.experimental import pallas as pl
from jax.experimental.pallas import tpu as pltpu

# ---- problem sizes (small, consistent with an n-way/k-shot episode) --------
N_WAY = 4            # classes per episode
K_SHOT = 2           # support shots per class
K_QUERY = 2          # query shots per class
META_BS = 2          # meta batch size (episodes)
C_IMG, H_IMG, W_IMG = 2, 8, 8
D_FEAT = C_IMG * H_IMG * W_IMG   # flattened feature dim = 128
ALPHA = 0.01         # inner-loop SGD lr  (Learner.alpha)
BETA = 0.001         # meta Adam lr       (MetaLearner.beta)
NUM_UPDATES = 2      # inner-loop updates

N_SUPPORT = N_WAY * K_SHOT       # 8
N_QUERY = N_WAY * K_QUERY        # 8


# ---------------------------------------------------------------------------
# Fused per-episode kernel: phi<-theta, NUM_UPDATES SGD steps on support,
# query grads + accuracy.  Runs once per grid point (one episode).
# ---------------------------------------------------------------------------
def _episode_kernel(sx_ref, sy_ref, qx_ref, qy_ref, w_ref, b_ref,
                    gw_ref, gb_ref, acc_ref, w_sc, b_sc):
    # phi.weight = theta.weight.clone(); phi.bias = theta.bias.clone()
    w_sc[...] = w_ref[...]                         # (C, D)
    b_sc[...] = b_ref[...]                         # (1, C)

    sx = sx_ref[0]                                 # (Ns, D) f32
    sy = sy_ref[0]                                 # (Ns, 1) int32
    iota_s = lax.broadcasted_iota(jnp.int32, (N_SUPPORT, N_WAY), 1)
    sy1h = (sy == iota_s).astype(jnp.float32)      # (Ns, C) one-hot

    def softmax_ce_grads(x, y1h, w, b, inv_n):
        # logits = x @ w^T + b  (contract D directly, w stays lane-dense)
        logits = lax.dot_general(
            x, w, (((1,), (1,)), ((), ())),
            preferred_element_type=jnp.float32) + b
        m = jnp.max(logits, axis=-1, keepdims=True)
        e = jnp.exp(logits - m)
        p = e / jnp.sum(e, axis=-1, keepdims=True)
        d = (p - y1h) * inv_n                      # (N, C)
        # gw = d^T @ x  (contract N directly, no materialized transpose)
        gw = lax.dot_general(
            d, x, (((0,), (0,)), ((), ())),
            preferred_element_type=jnp.float32)    # (C, D)
        gb = jnp.sum(d, axis=0, keepdims=True)     # (1, C)
        return logits, gw, gb

    # inner loop: SGD(phi, alpha) on support CE loss.
    # NUM_UPDATES is a tiny static constant -> unrolled straight-line code.
    for _ in range(NUM_UPDATES):
        _, gw_s, gb_s = softmax_ce_grads(sx, sy1h, w_sc[...], b_sc[...],
                                         1.0 / N_SUPPORT)
        w_sc[...] = w_sc[...] - ALPHA * gw_s
        b_sc[...] = b_sc[...] - ALPHA * gb_s

    # query evaluation: first-order grads of query CE loss w.r.t. phi + accuracy
    qx = qx_ref[0]                                 # (Nq, D)
    qy = qy_ref[0]                                 # (Nq, 1) int32
    iota_q = lax.broadcasted_iota(jnp.int32, (N_QUERY, N_WAY), 1)
    qy1h = (qy == iota_q).astype(jnp.float32)
    logits_q, gw_q, gb_q = softmax_ce_grads(qx, qy1h, w_sc[...], b_sc[...],
                                            1.0 / N_QUERY)
    gw_ref[0] = gw_q
    gb_ref[0] = gb_q

    # accuracy: argmax with first-index tie-break (matches torch.max), done
    # in float so only VPU/XLU float reductions are needed.
    rowmax = jnp.max(logits_q, axis=-1, keepdims=True)
    pred = jnp.min(
        jnp.where(logits_q == rowmax, iota_q.astype(jnp.float32),
                  jnp.float32(N_WAY)),
        axis=-1, keepdims=True)                    # (Nq, 1)
    correct = (pred == qy.astype(jnp.float32)).astype(jnp.float32)
    acc_ref[0] = jnp.sum(correct, axis=0, keepdims=True) * (1.0 / N_QUERY)


def run_episodes(theta_w, theta_b, sx, sy3, qx, qy3):
    """One pallas_call over all episodes.

    Returns per-episode (gw [MB,C,D], gb [MB,1,C], acc [MB,1,1])."""
    mb = sx.shape[0]
    out_shape = (
        jax.ShapeDtypeStruct((mb, N_WAY, D_FEAT), jnp.float32),
        jax.ShapeDtypeStruct((mb, 1, N_WAY), jnp.float32),
        jax.ShapeDtypeStruct((mb, 1, 1), jnp.float32),
    )
    grid_spec = pltpu.PrefetchScalarGridSpec(
        num_scalar_prefetch=0,
        grid=(mb,),
        in_specs=[
            pl.BlockSpec((1, N_SUPPORT, D_FEAT), lambda i: (i, 0, 0)),  # sx
            pl.BlockSpec((1, N_SUPPORT, 1), lambda i: (i, 0, 0)),       # sy
            pl.BlockSpec((1, N_QUERY, D_FEAT), lambda i: (i, 0, 0)),    # qx
            pl.BlockSpec((1, N_QUERY, 1), lambda i: (i, 0, 0)),         # qy
            pl.BlockSpec((N_WAY, D_FEAT), lambda i: (0, 0)),            # theta_w
            pl.BlockSpec((1, N_WAY), lambda i: (0, 0)),                 # theta_b
        ],
        out_specs=(
            pl.BlockSpec((1, N_WAY, D_FEAT), lambda i: (i, 0, 0)),      # gw
            pl.BlockSpec((1, 1, N_WAY), lambda i: (i, 0, 0)),           # gb
            pl.BlockSpec((1, 1, 1), lambda i: (i, 0, 0)),               # acc
        ),
        scratch_shapes=[
            pltpu.VMEM((N_WAY, D_FEAT), jnp.float32),   # phi.weight
            pltpu.VMEM((1, N_WAY), jnp.float32),        # phi.bias
        ],
    )
    return pl.pallas_call(
        _episode_kernel,
        out_shape=out_shape,
        grid_spec=grid_spec,
        compiler_params=pltpu.CompilerParams(
            dimension_semantics=("parallel",)),
    )(sx, sy3, qx, qy3, theta_w, theta_b)


# ---------------------------------------------------------------------------
# MetaLearner.meta_update: Adam step (fresh state, t=1) on theta using the
# summed query grads — exactly what the PyTorch backward-hook trick achieves.
# ---------------------------------------------------------------------------
def adam_step_t1(p, g, lr=BETA, b1=0.9, b2=0.999, eps=1e-8):
    m = (1.0 - b1) * g
    v = (1.0 - b2) * g * g
    mhat = m / (1.0 - b1)
    vhat = v / (1.0 - b2)
    return p - lr * mhat / (jnp.sqrt(vhat) + eps)


# TODO(synk): PyTorch builds a second-order graph (create_graph=True) but the
# backward hooks replace theta's grads with sum_grads_phi, so only the
# first-order (FOMAML) update is reproduced here.
@jax.jit
def meta_learner_forward(theta_w, theta_b, support_x, support_y, query_x, query_y):
    sy3 = support_y.astype(jnp.int32)[..., None]      # (MB, Ns, 1) for the kernel
    qy3 = query_y.astype(jnp.int32)[..., None]        # (MB, Nq, 1)
    gw, gb, acc = run_episodes(theta_w, theta_b, support_x, sy3, query_x, qy3)

    # sum_grads_phi across episodes, then one Adam(t=1) meta step on theta.
    sum_gw = jnp.sum(gw, axis=0)                      # (C, D)
    sum_gb = jnp.sum(gb, axis=0)                      # (1, C)
    new_w = adam_step_t1(theta_w, sum_gw)
    new_b = adam_step_t1(theta_b, sum_gb)
    return acc[:, 0, 0], (new_w, new_b)


# ---------------------------------------------------------------------------
if __name__ == "__main__":
    key = jax.random.PRNGKey(0)
    k_w, k_sx, k_sy, k_qx, k_qy = jax.random.split(key, 5)

    # deterministic "net" parameters (theta): Linear(D_FEAT, N_WAY)
    theta_w = 0.01 * jax.random.normal(k_w, (N_WAY, D_FEAT), dtype=jnp.float32)
    theta_b = jnp.zeros((1, N_WAY), dtype=jnp.float32)

    # episode data as NCHW images, flattened to [N, D] rows before the kernel
    support_img = jax.random.normal(
        k_sx, (META_BS, N_SUPPORT, C_IMG, H_IMG, W_IMG), jnp.float32)
    query_img = jax.random.normal(
        k_qx, (META_BS, N_QUERY, C_IMG, H_IMG, W_IMG), jnp.float32)
    support_x = support_img.reshape(META_BS, N_SUPPORT, D_FEAT)
    query_x = query_img.reshape(META_BS, N_QUERY, D_FEAT)
    support_y = jax.random.randint(k_sy, (META_BS, N_SUPPORT), 0, N_WAY, jnp.int32)
    query_y = jax.random.randint(k_qy, (META_BS, N_QUERY), 0, N_WAY, jnp.int32)

    accs, (new_w, new_b) = meta_learner_forward(
        theta_w, theta_b, support_x, support_y, query_x, query_y)

    jax.block_until_ready(accs)
    jax.block_until_ready(new_w)
    jax.block_until_ready(new_b)
    print("KERNEL_OK")
</pallas_src>

<mosaic_0001>
module attributes {stable_mosaic.version = 11 : i64} {
  func.func @_episode_kernel(%arg0: i32, %arg1: memref<1x8x128xf32, #tpu.memory_space<vmem>>, %arg2: memref<1x8x1xi32, #tpu.memory_space<vmem>>, %arg3: memref<1x8x128xf32, #tpu.memory_space<vmem>>, %arg4: memref<1x8x1xi32, #tpu.memory_space<vmem>>, %arg5: memref<4x128xf32, #tpu.memory_space<vmem>>, %arg6: memref<1x4xf32, #tpu.memory_space<vmem>>, %arg7: memref<1x4x128xf32, #tpu.memory_space<vmem>>, %arg8: memref<1x1x4xf32, #tpu.memory_space<vmem>>, %arg9: memref<1x1x1xf32, #tpu.memory_space<vmem>>, %arg10: memref<4x128xf32, #tpu.memory_space<vmem>>, %arg11: memref<1x4xf32, #tpu.memory_space<vmem>>) attributes {dimension_semantics = [#tpu.dimension_semantics<parallel>], iteration_bounds = array<i64: 2>, scalar_prefetch = 0 : i64, scratch_operands = 2 : i64, tpu.core_type = #tpu.core_type<tc>, window_params = [{transform_indices = @transform_0, window_bounds = array<i64: 1, 8, 128>}, {transform_indices = @transform_1, window_bounds = array<i64: 1, 8, 1>}, {transform_indices = @transform_2, window_bounds = array<i64: 1, 8, 128>}, {transform_indices = @transform_3, window_bounds = array<i64: 1, 8, 1>}, {pipeline_mode = #tpu.pipeline_mode<synchronous>, transform_indices = @transform_4, window_bounds = array<i64: 4, 128>}, {pipeline_mode = #tpu.pipeline_mode<synchronous>, transform_indices = @transform_5, window_bounds = array<i64: 1, 4>}, {transform_indices = @transform_6, window_bounds = array<i64: 1, 4, 128>}, {transform_indices = @transform_7, window_bounds = array<i64: 1, 1, 4>}, {transform_indices = @transform_8, window_bounds = array<i64: 1, 1, 1>}]} {
    %c0 = arith.constant 0 : index
    %c0_0 = arith.constant 0 : index
    %0 = vector.load %arg5[%c0, %c0_0] : memref<4x128xf32, #tpu.memory_space<vmem>>, vector<4x128xf32>
    %c0_1 = arith.constant 0 : index
    %c0_2 = arith.constant 0 : index
    %1 = vector.load %arg10[%c0_1, %c0_2] : memref<4x128xf32, #tpu.memory_space<vmem>>, vector<4x128xf32>
    tpu.vector_store %arg10[%c0_1, %c0_2], %0 {strides = array<i32>} : memref<4x128xf32, #tpu.memory_space<vmem>>, vector<4x128xf32>,
    %c0_3 = arith.constant 0 : index
    %c0_4 = arith.constant 0 : index
    %2 = vector.load %arg6[%c0_3, %c0_4] : memref<1x4xf32, #tpu.memory_space<vmem>>, vector<1x4xf32>
    %c0_5 = arith.constant 0 : index
    %c0_6 = arith.constant 0 : index
    %3 = vector.load %arg11[%c0_5, %c0_6] : memref<1x4xf32, #tpu.memory_space<vmem>>, vector<1x4xf32>
    tpu.vector_store %arg11[%c0_5, %c0_6], %2 {strides = array<i32>} : memref<1x4xf32, #tpu.memory_space<vmem>>, vector<1x4xf32>,
    %c0_7 = arith.constant 0 : index
    %c0_8 = arith.constant 0 : index
    %c0_9 = arith.constant 0 : index
    %4 = vector.load %arg1[%c0_7, %c0_8, %c0_9] : memref<1x8x128xf32, #tpu.memory_space<vmem>>, vector<1x8x128xf32>
    %5 = vector.shape_cast %4 : vector<1x8x128xf32> to vector<8x128xf32>
    %c0_10 = arith.constant 0 : index
    %c0_11 = arith.constant 0 : index
    %c0_12 = arith.constant 0 : index
    %6 = vector.load %arg2[%c0_10, %c0_11, %c0_12] : memref<1x8x1xi32, #tpu.memory_space<vmem>>, vector<1x8x1xi32>
    %7 = vector.shape_cast %6 : vector<1x8x1xi32> to vector<8x1xi32>
    %8 = tpu.iota {dimensions = array<i32: 1>} : vector<8x4xi32>
    %9 = vector.broadcast %7 : vector<8x1xi32> to vector<8x4xi32>
    %10 = arith.cmpi eq, %9, %8 : vector<8x4xi32>
    %11 = arith.extui %10 : vector<8x4xi1> to vector<8x4xi32>
    %12 = arith.sitofp %11 : vector<8x4xi32> to vector<8x4xf32>
    %c0_13 = arith.constant 0 : index
    %c0_14 = arith.constant 0 : index
    %13 = vector.load %arg10[%c0_13, %c0_14] : memref<4x128xf32, #tpu.memory_space<vmem>>, vector<4x128xf32>
    %c0_15 = arith.constant 0 : index
    %c0_16 = arith.constant 0 : index
    %14 = vector.load %arg11[%c0_15, %c0_16] : memref<1x4xf32, #tpu.memory_space<vmem>>, vector<1x4xf32>
    %cst = arith.constant dense<0.000000e+00> : vector<8x4xf32>
    %15 = tpu.matmul %5, %13, %cst {dimension_numbers = #tpu.dot_dimension_numbers<[1], [1], [0], [0], [0, 0, 1, 0], [], []>} : vector<8x128xf32>, vector<4x128xf32>, vector<8x4xf32> -> vector<8x4xf32>
    %16 = vector.broadcast %14 : vector<1x4xf32> to vector<8x4xf32>
    %17 = arith.addf %15, %16 : vector<8x4xf32>
    %cst_17 = arith.constant dense<0xFF800000> : vector<8xf32>
    %18 = vector.multi_reduction <maximumf>, %17, %cst_17 [1] : vector<8x4xf32> to vector<8xf32>
    %19 = vector.shape_cast %18 : vector<8xf32> to vector<8x1xf32>
    %20 = vector.broadcast %19 : vector<8x1xf32> to vector<8x4xf32>
    %21 = arith.subf %17, %20 : vector<8x4xf32>
    %22 = math.exp %21 : vector<8x4xf32>
    %cst_18 = arith.constant dense<0.000000e+00> : vector<8xf32>
    %23 = vector.multi_reduction <add>, %22, %cst_18 [1] : vector<8x4xf32> to vector<8xf32>
    %24 = vector.shape_cast %23 : vector<8xf32> to vector<8x1xf32>
    %25 = vector.broadcast %24 : vector<8x1xf32> to vector<8x4xf32>
    %26 = arith.divf %22, %25 : vector<8x4xf32>
    %27 = arith.subf %26, %12 : vector<8x4xf32>
    %cst_19 = arith.constant 1.250000e-01 : f32
    %28 = vector.broadcast %cst_19 : f32 to vector<8x4xf32>
    %29 = arith.mulf %27, %28 : vector<8x4xf32>
    %cst_20 = arith.constant dense<0.000000e+00> : vector<4x128xf32>
    %30 = tpu.matmul %29, %5, %cst_20 {dimension_numbers = #tpu.dot_dimension_numbers<[0], [0], [1], [1], [0, 1, 1, 1], [], []>} : vector<8x4xf32>, vector<8x128xf32>, vector<4x128xf32> -> vector<4x128xf32>
    %cst_21 = arith.constant dense<0.000000e+00> : vector<4xf32>
    %31 = vector.multi_reduction <add>, %29, %cst_21 [0] : vector<8x4xf32> to vector<4xf32>
    %32 = vector.shape_cast %31 : vector<4xf32> to vector<1x4xf32>
    %c0_22 = arith.constant 0 : index
    %c0_23 = arith.constant 0 : index
    %33 = vector.load %arg10[%c0_22, %c0_23] : memref<4x128xf32, #tpu.memory_space<vmem>>, vector<4x128xf32>
    %cst_24 = arith.constant 0.00999999977 : f32
    %34 = vector.broadcast %cst_24 : f32 to vector<4x128xf32>
    %35 = arith.mulf %34, %30 : vector<4x128xf32>
    %36 = arith.subf %33, %35 : vector<4x128xf32>
    %c0_25 = arith.constant 0 : index
    %c0_26 = arith.constant 0 : index
    %37 = vector.load %arg10[%c0_25, %c0_26] : memref<4x128xf32, #tpu.memory_space<vmem>>, vector<4x128xf32>
    tpu.vector_store %arg10[%c0_25, %c0_26], %36 {strides = array<i32>} : memref<4x128xf32, #tpu.memory_space<vmem>>, vector<4x128xf32>,
    %c0_27 = arith.constant 0 : index
    %c0_28 = arith.constant 0 : index
    %38 = vector.load %arg11[%c0_27, %c0_28] : memref<1x4xf32, #tpu.memory_space<vmem>>, vector<1x4xf32>
    %cst_29 = arith.constant 0.00999999977 : f32
    %39 = vector.broadcast %cst_29 : f32 to vector<1x4xf32>
    %40 = arith.mulf %39, %32 : vector<1x4xf32>
    %41 = arith.subf %38, %40 : vector<1x4xf32>
    %c0_30 = arith.constant 0 : index
    %c0_31 = arith.constant 0 : index
    %42 = vector.load %arg11[%c0_30, %c0_31] : memref<1x4xf32, #tpu.memory_space<vmem>>, vector<1x4xf32>
    tpu.vector_store %arg11[%c0_30, %c0_31], %41 {strides = array<i32>} : memref<1x4xf32, #tpu.memory_space<vmem>>, vector<1x4xf32>,
    %c0_32 = arith.constant 0 : index
    %c0_33 = arith.constant 0 : index
    %43 = vector.load %arg10[%c0_32, %c0_33] : memref<4x128xf32, #tpu.memory_space<vmem>>, vector<4x128xf32>
    %c0_34 = arith.constant 0 : index
    %c0_35 = arith.constant 0 : index
    %44 = vector.load %arg11[%c0_34, %c0_35] : memref<1x4xf32, #tpu.memory_space<vmem>>, vector<1x4xf32>
    %cst_36 = arith.constant dense<0.000000e+00> : vector<8x4xf32>
    %45 = tpu.matmul %5, %43, %cst_36 {dimension_numbers = #tpu.dot_dimension_numbers<[1], [1], [0], [0], [0, 0, 1, 0], [], []>} : vector<8x128xf32>, vector<4x128xf32>, vector<8x4xf32> -> vector<8x4xf32>
    %46 = vector.broadcast %44 : vector<1x4xf32> to vector<8x4xf32>
    %47 = arith.addf %45, %46 : vector<8x4xf32>
    %cst_37 = arith.constant dense<0xFF800000> : vector<8xf32>
    %48 = vector.multi_reduction <maximumf>, %47, %cst_37 [1] : vector<8x4xf32> to vector<8xf32>
    %49 = vector.shape_cast %48 : vector<8xf32> to vector<8x1xf32>
    %50 = vector.broadcast %49 : vector<8x1xf32> to vector<8x4xf32>
    %51 = arith.subf %47, %50 : vector<8x4xf32>
    %52 = math.exp %51 : vector<8x4xf32>
    %cst_38 = arith.constant dense<0.000000e+00> : vector<8xf32>
    %53 = vector.multi_reduction <add>, %52, %cst_38 [1] : vector<8x4xf32> to vector<8xf32>
    %54 = vector.shape_cast %53 : vector<8xf32> to vector<8x1xf32>
    %55 = vector.broadcast %54 : vector<8x1xf32> to vector<8x4xf32>
    %56 = arith.divf %52, %55 : vector<8x4xf32>
    %57 = arith.subf %56, %12 : vector<8x4xf32>
    %cst_39 = arith.constant 1.250000e-01 : f32
    %58 = vector.broadcast %cst_39 : f32 to vector<8x4xf32>
    %59 = arith.mulf %57, %58 : vector<8x4xf32>
    %cst_40 = arith.constant dense<0.000000e+00> : vector<4x128xf32>
    %60 = tpu.matmul %59, %5, %cst_40 {dimension_numbers = #tpu.dot_dimension_numbers<[0], [0], [1], [1], [0, 1, 1, 1], [], []>} : vector<8x4xf32>, vector<8x128xf32>, vector<4x128xf32> -> vector<4x128xf32>
    %cst_41 = arith.constant dense<0.000000e+00> : vector<4xf32>
    %61 = vector.multi_reduction <add>, %59, %cst_41 [0] : vector<8x4xf32> to vector<4xf32>
    %62 = vector.shape_cast %61 : vector<4xf32> to vector<1x4xf32>
    %c0_42 = arith.constant 0 : index
    %c0_43 = arith.constant 0 : index
    %63 = vector.load %arg10[%c0_42, %c0_43] : memref<4x128xf32, #tpu.memory_space<vmem>>, vector<4x128xf32>
    %cst_44 = arith.constant 0.00999999977 : f32
    %64 = vector.broadcast %cst_44 : f32 to vector<4x128xf32>
    %65 = arith.mulf %64, %60 : vector<4x128xf32>
    %66 = arith.subf %63, %65 : vector<4x128xf32>
    %c0_45 = arith.constant 0 : index
    %c0_46 = arith.constant 0 : index
    %67 = vector.load %arg10[%c0_45, %c0_46] : memref<4x128xf32, #tpu.memory_space<vmem>>, vector<4x128xf32>
    tpu.vector_store %arg10[%c0_45, %c0_46], %66 {strides = array<i32>} : memref<4x128xf32, #tpu.memory_space<vmem>>, vector<4x128xf32>,
    %c0_47 = arith.constant 0 : index
    %c0_48 = arith.constant 0 : index
    %68 = vector.load %arg11[%c0_47, %c0_48] : memref<1x4xf32, #tpu.memory_space<vmem>>, vector<1x4xf32>
    %cst_49 = arith.constant 0.00999999977 : f32
    %69 = vector.broadcast %cst_49 : f32 to vector<1x4xf32>
    %70 = arith.mulf %69, %62 : vector<1x4xf32>
    %71 = arith.subf %68, %70 : vector<1x4xf32>
    %c0_50 = arith.constant 0 : index
    %c0_51 = arith.constant 0 : index
    %72 = vector.load %arg11[%c0_50, %c0_51] : memref<1x4xf32, #tpu.memory_space<vmem>>, vector<1x4xf32>
    tpu.vector_store %arg11[%c0_50, %c0_51], %71 {strides = array<i32>} : memref<1x4xf32, #tpu.memory_space<vmem>>, vector<1x4xf32>,
    %c0_52 = arith.constant 0 : index
    %c0_53 = arith.constant 0 : index
    %c0_54 = arith.constant 0 : index
    %73 = vector.load %arg3[%c0_52, %c0_53, %c0_54] : memref<1x8x128xf32, #tpu.memory_space<vmem>>, vector<1x8x128xf32>
    %74 = vector.shape_cast %73 : vector<1x8x128xf32> to vector<8x128xf32>
    %c0_55 = arith.constant 0 : index
    %c0_56 = arith.constant 0 : index
    %c0_57 = arith.constant 0 : index
    %75 = vector.load %arg4[%c0_55, %c0_56, %c0_57] : memref<1x8x1xi32, #tpu.memory_space<vmem>>, vector<1x8x1xi32>
    %76 = vector.shape_cast %75 : vector<1x8x1xi32> to vector<8x1xi32>
    %77 = tpu.iota {dimensions = array<i32: 1>} : vector<8x4xi32>
    %78 = vector.broadcast %76 : vector<8x1xi32> to vector<8x4xi32>
    %79 = arith.cmpi eq, %78, %77 : vector<8x4xi32>
    %80 = arith.extui %79 : vector<8x4xi1> to vector<8x4xi32>
    %81 = arith.sitofp %80 : vector<8x4xi32> to vector<8x4xf32>
    %c0_58 = arith.constant 0 : index
    %c0_59 = arith.constant 0 : index
    %82 = vector.load %arg10[%c0_58, %c0_59] : memref<4x128xf32, #tpu.memory_space<vmem>>, vector<4x128xf32>
    %c0_60 = arith.constant 0 : index
    %c0_61 = arith.constant 0 : index
    %83 = vector.load %arg11[%c0_60, %c0_61] : memref<1x4xf32, #tpu.memory_space<vmem>>, vector<1x4xf32>
    %cst_62 = arith.constant dense<0.000000e+00> : vector<8x4xf32>
    %84 = tpu.matmul %74, %82, %cst_62 {dimension_numbers = #tpu.dot_dimension_numbers<[1], [1], [0], [0], [0, 0, 1, 0], [], []>} : vector<8x128xf32>, vector<4x128xf32>, vector<8x4xf32> -> vector<8x4xf32>
    %85 = vector.broadcast %83 : vector<1x4xf32> to vector<8x4xf32>
    %86 = arith.addf %84, %85 : vector<8x4xf32>
    %cst_63 = arith.constant dense<0xFF800000> : vector<8xf32>
    %87 = vector.multi_reduction <maximumf>, %86, %cst_63 [1] : vector<8x4xf32> to vector<8xf32>
    %88 = vector.shape_cast %87 : vector<8xf32> to vector<8x1xf32>
    %89 = vector.broadcast %88 : vector<8x1xf32> to vector<8x4xf32>
    %90 = arith.subf %86, %89 : vector<8x4xf32>
    %91 = math.exp %90 : vector<8x4xf32>
    %cst_64 = arith.constant dense<0.000000e+00> : vector<8xf32>
    %92 = vector.multi_reduction <add>, %91, %cst_64 [1] : vector<8x4xf32> to vector<8xf32>
    %93 = vector.shape_cast %92 : vector<8xf32> to vector<8x1xf32>
    %94 = vector.broadcast %93 : vector<8x1xf32> to vector<8x4xf32>
    %95 = arith.divf %91, %94 : vector<8x4xf32>
    %96 = arith.subf %95, %81 : vector<8x4xf32>
    %cst_65 = arith.constant 1.250000e-01 : f32
    %97 = vector.broadcast %cst_65 : f32 to vector<8x4xf32>
    %98 = arith.mulf %96, %97 : vector<8x4xf32>
    %cst_66 = arith.constant dense<0.000000e+00> : vector<4x128xf32>
    %99 = tpu.matmul %98, %74, %cst_66 {dimension_numbers = #tpu.dot_dimension_numbers<[0], [0], [1], [1], [0, 1, 1, 1], [], []>} : vector<8x4xf32>, vector<8x128xf32>, vector<4x128xf32> -> vector<4x128xf32>
    %cst_67 = arith.constant dense<0.000000e+00> : vector<4xf32>
    %100 = vector.multi_reduction <add>, %98, %cst_67 [0] : vector<8x4xf32> to vector<4xf32>
    %101 = vector.shape_cast %100 : vector<4xf32> to vector<1x4xf32>
    %c0_68 = arith.constant 0 : index
    %c0_69 = arith.constant 0 : index
    %c0_70 = arith.constant 0 : index
    %102 = vector.load %arg7[%c0_68, %c0_69, %c0_70] : memref<1x4x128xf32, #tpu.memory_space<vmem>>, vector<1x4x128xf32>
    %103 = vector.shape_cast %102 : vector<1x4x128xf32> to vector<4x128xf32>
    %104 = vector.shape_cast %99 : vector<4x128xf32> to vector<1x4x128xf32>
    tpu.vector_store %arg7[%c0_68, %c0_69, %c0_70], %104 {strides = array<i32>} : memref<1x4x128xf32, #tpu.memory_space<vmem>>, vector<1x4x128xf32>,
    %c0_71 = arith.constant 0 : index
    %c0_72 = arith.constant 0 : index
    %c0_73 = arith.constant 0 : index
    %105 = vector.load %arg8[%c0_71, %c0_72, %c0_73] : memref<1x1x4xf32, #tpu.memory_space<vmem>>, vector<1x1x4xf32>
    %106 = vector.shape_cast %105 : vector<1x1x4xf32> to vector<1x4xf32>
    %107 = vector.shape_cast %101 : vector<1x4xf32> to vector<1x1x4xf32>
    tpu.vector_store %arg8[%c0_71, %c0_72, %c0_73], %107 {strides = array<i32>} : memref<1x1x4xf32, #tpu.memory_space<vmem>>, vector<1x1x4xf32>,
    %cst_74 = arith.constant dense<0xFF800000> : vector<8xf32>
    %108 = vector.multi_reduction <maximumf>, %86, %cst_74 [1] : vector<8x4xf32> to vector<8xf32>
    %109 = vector.shape_cast %108 : vector<8xf32> to vector<8x1xf32>
    %110 = vector.broadcast %109 : vector<8x1xf32> to vector<8x4xf32>
    %111 = arith.cmpf oeq, %86, %110 : vector<8x4xf32>
    %112 = arith.sitofp %77 : vector<8x4xi32> to vector<8x4xf32>
    %cst_75 = arith.constant 4.000000e+00 : f32
    %113 = vector.broadcast %cst_75 : f32 to vector<8x4xf32>
    %114 = arith.select %111, %112, %113 : vector<8x4xi1>, vector<8x4xf32>
    %cst_76 = arith.constant dense<0x7F800000> : vector<8xf32>
    %115 = vector.multi_reduction <minimumf>, %114, %cst_76 [1] : vector<8x4xf32> to vector<8xf32>
    %116 = vector.shape_cast %115 : vector<8xf32> to vector<8x1xf32>
    %117 = arith.sitofp %76 : vector<8x1xi32> to vector<8x1xf32>
    %118 = arith.cmpf oeq, %116, %117 : vector<8x1xf32>
    %119 = arith.extui %118 : vector<8x1xi1> to vector<8x1xi32>
    %120 = arith.sitofp %119 : vector<8x1xi32> to vector<8x1xf32>
    %cst_77 = arith.constant dense<0.000000e+00> : vector<1xf32>
    %121 = vector.multi_reduction <add>, %120, %cst_77 [0] : vector<8x1xf32> to vector<1xf32>
    %122 = vector.shape_cast %121 : vector<1xf32> to vector<1x1xf32>
    %cst_78 = arith.constant 1.250000e-01 : f32
    %123 = vector.broadcast %cst_78 : f32 to vector<1x1xf32>
    %124 = arith.mulf %122, %123 : vector<1x1xf32>
    %c0_79 = arith.constant 0 : index
    %c0_80 = arith.constant 0 : index
    %c0_81 = arith.constant 0 : index
    %125 = vector.load %arg9[%c0_79, %c0_80, %c0_81] : memref<1x1x1xf32, #tpu.memory_space<vmem>>, vector<1x1x1xf32>
    %126 = vector.shape_cast %125 : vector<1x1x1xf32> to vector<1x1xf32>
    %127 = vector.shape_cast %124 : vector<1x1xf32> to vector<1x1x1xf32>
    tpu.vector_store %arg9[%c0_79, %c0_80, %c0_81], %127 {strides = array<i32>} : memref<1x1x1xf32, #tpu.memory_space<vmem>>, vector<1x1x1xf32>,
    return
  }
  func.func @transform_0(%arg0: i32) -> (i32, i32, i32) {
    %c0_i32 = arith.constant 0 : i32
    %c0_i32_0 = arith.constant 0 : i32
    %c0_i32_1 = arith.constant 0 : i32
    return %arg0, %c0_i32, %c0_i32_0 : i32, i32, i32
  }
  func.func @transform_1(%arg0: i32) -> (i32, i32, i32) {
    %c0_i32 = arith.constant 0 : i32
    %c0_i32_0 = arith.constant 0 : i32
    %c0_i32_1 = arith.constant 0 : i32
    return %arg0, %c0_i32, %c0_i32_0 : i32, i32, i32
  }
  func.func @transform_2(%arg0: i32) -> (i32, i32, i32) {
    %c0_i32 = arith.constant 0 : i32
    %c0_i32_0 = arith.constant 0 : i32
    %c0_i32_1 = arith.constant 0 : i32
    return %arg0, %c0_i32, %c0_i32_0 : i32, i32, i32
  }
  func.func @transform_3(%arg0: i32) -> (i32, i32, i32) {
    %c0_i32 = arith.constant 0 : i32
    %c0_i32_0 = arith.constant 0 : i32
    %c0_i32_1 = arith.constant 0 : i32
    return %arg0, %c0_i32, %c0_i32_0 : i32, i32, i32
  }
  func.func @transform_4(%arg0: i32) -> (i32, i32) {
    %c0_i32 = arith.constant 0 : i32
    %c0_i32_0 = arith.constant 0 : i32
    %c0_i32_1 = arith.constant 0 : i32
    return %c0_i32, %c0_i32_0 : i32, i32
  }
  func.func @transform_5(%arg0: i32) -> (i32, i32) {
    %c0_i32 = arith.constant 0 : i32
    %c0_i32_0 = arith.constant 0 : i32
    %c0_i32_1 = arith.constant 0 : i32
    return %c0_i32, %c0_i32_0 : i32, i32
  }
  func.func @transform_6(%arg0: i32) -> (i32, i32, i32) {
    %c0_i32 = arith.constant 0 : i32
    %c0_i32_0 = arith.constant 0 : i32
    %c0_i32_1 = arith.constant 0 : i32
    return %arg0, %c0_i32, %c0_i32_0 : i32, i32, i32
  }
  func.func @transform_7(%arg0: i32) -> (i32, i32, i32) {
    %c0_i32 = arith.constant 0 : i32
    %c0_i32_0 = arith.constant 0 : i32
    %c0_i32_1 = arith.constant 0 : i32
    return %arg0, %c0_i32, %c0_i32_0 : i32, i32, i32
  }
  func.func @transform_8(%arg0: i32) -> (i32, i32, i32) {
    %c0_i32 = arith.constant 0 : i32
    %c0_i32_0 = arith.constant 0 : i32
    %c0_i32_1 = arith.constant 0 : i32
    return %arg0, %c0_i32, %c0_i32_0 : i32, i32, i32
  }
}

</mosaic_0001>

<llo_original>
// kernel: meta_learner_forward.1
$region0: #{meta_learner_forward.1}
  #allocation0 [shape = 'u32[]', space=smem, size = 0x4, offset = 0x4, fixed_abs, tag = 'smem constant byte address 0x4 - core index']
  #allocation1 [shape = 'u32[144,128]{1,0:T(1,128)}', space=vmem, size = 0x12000, scoped, tag = 'internal scratch']
  #allocation2 [shape = 'f32[4,128]{1,0:T(4,128)}', space=vmem, size = 0x800, scoped, tag = 'scratch operand']
  #allocation3 [shape = 'f32[1,4]{1,0:T(1,128)}', space=vmem, size = 0x200, scoped, tag = 'scratch operand']
  %s0 = inlined_call_operand.vmem [shape: f32[2,8,128], index: 0, kind: input, shape index: {}]
  %s1 = inlined_call_operand.vmem [shape: s32[2,8,1], index: 1, kind: input, shape index: {}]
  %s2 = inlined_call_operand.vmem [shape: f32[2,8,128], index: 2, kind: input, shape index: {}]
  %s3 = inlined_call_operand.vmem [shape: s32[2,8,1], index: 3, kind: input, shape index: {}]
  %s4 = inlined_call_operand.vmem [shape: f32[4,128], index: 4, kind: input, shape index: {}]
  %s5 = inlined_call_operand.vmem [shape: f32[1,4], index: 5, kind: input, shape index: {}]
  %s6 = inlined_call_operand.vmem [shape: f32[2,4,128], index: 6, kind: output, shape index: {0}]
  %s7 = inlined_call_operand.vmem [shape: f32[2,1,4], index: 7, kind: output, shape index: {1}]
  %s8 = inlined_call_operand.vmem [shape: f32[2,1,1], index: 8, kind: output, shape index: {2}]
  %9 = xla_tuple %s6, %s7, %s8
  %s10 = sld [smem:[#allocation0]]
  $region73: #{meta_learner_forward.1} parent=0
    _
  %s12 = ssub.s32 1, %s10
  %s13 = scalar_select 0, %s12, %s10
  loop: start=0, step=1, limit=4
  $region2: #{meta_learner_forward.1} parent=0 // loop_pre_header
    _
  $region3: #{meta_learner_forward.1} parent=0 // loop_header
    %s15 = sphi 0, %s19
    %p16 = scmp.ge.s32.totalorder %s15, 4
    %s25 = sphi 0, %s27
    %s28 = sphi 0, %s25
    %s29 = sphi 0, %s28
    %s45 = sphi 0, %s29
    %s51 = sphi 0, %s53
    %s54 = sphi 0, %s51
    %s55 = sphi 0, %s54
    %s71 = sphi 0, %s55
    %s77 = sphi 0, %s79
    %s80 = sphi 0, %s77
    %s81 = sphi 0, %s80
    %s97 = sphi 0, %s81
    %s103 = sphi 0, %s105
    %s106 = sphi 0, %s103
    %s107 = sphi 0, %s106
    %s123 = sphi 0, %s107
    %s127 = sphi 0, %s127
    %s129 = sphi 0, %s127
    %s130 = sphi 0, %s129
    %s144 = sphi 0, %s130
    %s148 = sphi 0, %s148
    %s150 = sphi 0, %s148
    %s151 = sphi 0, %s150
    %s165 = sphi 0, %s151
    %s171 = sphi 0, %s173
    %s174 = sphi 0, %s171
    %s175 = sphi 0, %s174
    %s191 = sphi 0, %s175
    %s197 = sphi 0, %s199
    %s200 = sphi 0, %s197
    %s201 = sphi 0, %s200
    %s217 = sphi 0, %s201
    %s223 = sphi 0, %s225
    %s226 = sphi 0, %s223
    %s227 = sphi 0, %s226
    %s243 = sphi 0, %s227
  $region4: #{meta_learner_forward.1} parent=0 // loop_header_branch
    %18 = sbr.rel (%p16) target = $region8
  $region5: #{meta_learner_forward.1} parent=0 // loop_body
    %s20 = ssub.s32 %s15, 1
    %s21 = ssub.s32 %s15, 2
    %s22 = sadd.s32 %s15, 1
    %s23 = ssub.s32 %s15, %s22
    %p24 = scmp.eq.s32.totalorder %s23, 0
    %s26 = sadd.s32 %s25, 1
    %s27 = scalar_select %p24, %s25, %s26
    %p30 = pneg %p24
    %p31 = scmp.eq.s32.totalorder %s15, 1
    %p32 = por %p30, %p31
    %p33 = scmp.ne.s32.totalorder %s25, %s28
    %p34 = scmp.eq.s32.totalorder %s15, 0
    %p35 = por %p33, %p34
    %p36 = scmp.ne.s32.totalorder %s25, %s28
    %p37 = scmp.eq.s32.totalorder %s20, 1
    %p38 = por %p36, %p37
    %p39 = scmp.ne.s32.totalorder %s28, %s29
    %p40 = scmp.eq.s32.totalorder %s20, 0
    %p41 = por %p39, %p40
    %p42 = scmp.ne.s32.totalorder %s28, %s29
    %p43 = scmp.eq.s32.totalorder %s21, 1
    %p44 = por %p42, %p43
    %p46 = scmp.ne.s32.totalorder %s29, %s45
    %p47 = scmp.eq.s32.totalorder %s21, 0
    %p48 = por %p46, %p47
    %s49 = ssub.s32 %s15, %s22
    %p50 = scmp.eq.s32.totalorder %s49, 0
    %s52 = sadd.s32 %s51, 1
    %s53 = scalar_select %p50, %s51, %s52
    %p56 = pneg %p50
    %p57 = scmp.eq.s32.totalorder %s15, 1
    %p58 = por %p56, %p57
    %p59 = scmp.ne.s32.totalorder %s51, %s54
    %p60 = scmp.eq.s32.totalorder %s15, 0
    %p61 = por %p59, %p60
    %p62 = scmp.ne.s32.totalorder %s51, %s54
    %p63 = scmp.eq.s32.totalorder %s20, 1
    %p64 = por %p62, %p63
    %p65 = scmp.ne.s32.totalorder %s54, %s55
    %p66 = scmp.eq.s32.totalorder %s20, 0
    %p67 = por %p65, %p66
    %p68 = scmp.ne.s32.totalorder %s54, %s55
    %p69 = scmp.eq.s32.totalorder %s21, 1
    %p70 = por %p68, %p69
    %p72 = scmp.ne.s32.totalorder %s55, %s71
    %p73 = scmp.eq.s32.totalorder %s21, 0
    %p74 = por %p72, %p73
    %s75 = ssub.s32 %s15, %s22
    %p76 = scmp.eq.s32.totalorder %s75, 0
    %s78 = sadd.s32 %s77, 1
    %s79 = scalar_select %p76, %s77, %s78
    %p82 = pneg %p76
    %p83 = scmp.eq.s32.totalorder %s15, 1
    %p84 = por %p82, %p83
    %p85 = scmp.ne.s32.totalorder %s77, %s80
    %p86 = scmp.eq.s32.totalorder %s15, 0
    %p87 = por %p85, %p86
    %p88 = scmp.ne.s32.totalorder %s77, %s80
    %p89 = scmp.eq.s32.totalorder %s20, 1
    %p90 = por %p88, %p89
    %p91 = scmp.ne.s32.totalorder %s80, %s81
    %p92 = scmp.eq.s32.totalorder %s20, 0
    %p93 = por %p91, %p92
    %p94 = scmp.ne.s32.totalorder %s80, %s81
    %p95 = scmp.eq.s32.totalorder %s21, 1
    %p96 = por %p94, %p95
    %p98 = scmp.ne.s32.totalorder %s81, %s97
    %p99 = scmp.eq.s32.totalorder %s21, 0
    %p100 = por %p98, %p99
    %s101 = ssub.s32 %s15, %s22
    %p102 = scmp.eq.s32.totalorder %s101, 0
    %s104 = sadd.s32 %s103, 1
    %s105 = scalar_select %p102, %s103, %s104
    %p108 = pneg %p102
    %p109 = scmp.eq.s32.totalorder %s15, 1
    %p110 = por %p108, %p109
    %p111 = scmp.ne.s32.totalorder %s103, %s106
    %p112 = scmp.eq.s32.totalorder %s15, 0
    %p113 = por %p111, %p112
    %p114 = scmp.ne.s32.totalorder %s103, %s106
    %p115 = scmp.eq.s32.totalorder %s20, 1
    %p116 = por %p114, %p115
    %p117 = scmp.ne.s32.totalorder %s106, %s107
    %p118 = scmp.eq.s32.totalorder %s20, 0
    %p119 = por %p117, %p118
    %p120 = scmp.ne.s32.totalorder %s106, %s107
    %p121 = scmp.eq.s32.totalorder %s21, 1
    %p122 = por %p120, %p121
    %p124 = scmp.ne.s32.totalorder %s107, %s123
    %p125 = scmp.eq.s32.totalorder %s21, 0
    %p126 = por %p124, %p125
    %s128 = sadd.s32 %s127, 1
    %p131 = scmp.eq.s32.totalorder %s15, 1
    %p132 = scmp.ne.s32.totalorder %s127, %s129
    %p133 = scmp.eq.s32.totalorder %s15, 0
    %p134 = por %p132, %p133
    %p135 = scmp.ne.s32.totalorder %s127, %s129
    %p136 = scmp.eq.s32.totalorder %s20, 1
    %p137 = por %p135, %p136
    %p138 = scmp.ne.s32.totalorder %s129, %s130
    %p139 = scmp.eq.s32.totalorder %s20, 0
    %p140 = por %p138, %p139
    %p141 = scmp.ne.s32.totalorder %s129, %s130
    %p142 = scmp.eq.s32.totalorder %s21, 1
    %p143 = por %p141, %p142
    %p145 = scmp.ne.s32.totalorder %s130, %s144
    %p146 = scmp.eq.s32.totalorder %s21, 0
    %p147 = por %p145, %p146
    %s149 = sadd.s32 %s148, 1
    %p152 = scmp.eq.s32.totalorder %s15, 1
    %p153 = scmp.ne.s32.totalorder %s148, %s150
    %p154 = scmp.eq.s32.totalorder %s15, 0
    %p155 = por %p153, %p154
    %p156 = scmp.ne.s32.totalorder %s148, %s150
    %p157 = scmp.eq.s32.totalorder %s20, 1
    %p158 = por %p156, %p157
    %p159 = scmp.ne.s32.totalorder %s150, %s151
    %p160 = scmp.eq.s32.totalorder %s20, 0
    %p161 = por %p159, %p160
    %p162 = scmp.ne.s32.totalorder %s150, %s151
    %p163 = scmp.eq.s32.totalorder %s21, 1
    %p164 = por %p162, %p163
    %p166 = scmp.ne.s32.totalorder %s151, %s165
    %p167 = scmp.eq.s32.totalorder %s21, 0
    %p168 = por %p166, %p167
    %s169 = ssub.s32 %s15, %s22
    %p170 = scmp.eq.s32.totalorder %s169, 0
    %s172 = sadd.s32 %s171, 1
    %s173 = scalar_select %p170, %s171, %s172
    %p176 = pneg %p170
    %p177 = scmp.eq.s32.totalorder %s15, 1
    %p178 = por %p176, %p177
    %p179 = scmp.ne.s32.totalorder %s171, %s174
    %p180 = scmp.eq.s32.totalorder %s15, 0
    %p181 = por %p179, %p180
    %p182 = scmp.ne.s32.totalorder %s171, %s174
    %p183 = scmp.eq.s32.totalorder %s20, 1
    %p184 = por %p182, %p183
    %p185 = scmp.ne.s32.totalorder %s174, %s175
    %p186 = scmp.eq.s32.totalorder %s20, 0
    %p187 = por %p185, %p186
    %p188 = scmp.ne.s32.totalorder %s174, %s175
    %p189 = scmp.eq.s32.totalorder %s21, 1
    %p190 = por %p188, %p189
    %p192 = scmp.ne.s32.totalorder %s175, %s191
    %p193 = scmp.eq.s32.totalorder %s21, 0
    %p194 = por %p192, %p193
    %s195 = ssub.s32 %s15, %s22
    %p196 = scmp.eq.s32.totalorder %s195, 0
    %s198 = sadd.s32 %s197, 1
    %s199 = scalar_select %p196, %s197, %s198
    %p202 = pneg %p196
    %p203 = scmp.eq.s32.totalorder %s15, 1
    %p204 = por %p202, %p203
    %p205 = scmp.ne.s32.totalorder %s197, %s200
    %p206 = scmp.eq.s32.totalorder %s15, 0
    %p207 = por %p205, %p206
    %p208 = scmp.ne.s32.totalorder %s197, %s200
    %p209 = scmp.eq.s32.totalorder %s20, 1
    %p210 = por %p208, %p209
    %p211 = scmp.ne.s32.totalorder %s200, %s201
    %p212 = scmp.eq.s32.totalorder %s20, 0
    %p213 = por %p211, %p212
    %p214 = scmp.ne.s32.totalorder %s200, %s201
    %p215 = scmp.eq.s32.totalorder %s21, 1
    %p216 = por %p214, %p215
    %p218 = scmp.ne.s32.totalorder %s201, %s217
    %p219 = scmp.eq.s32.totalorder %s21, 0
    %p220 = por %p218, %p219
    %s221 = ssub.s32 %s15, %s22
    %p222 = scmp.eq.s32.totalorder %s221, 0
    %s224 = sadd.s32 %s223, 1
    %s225 = scalar_select %p222, %s223, %s224
    %p228 = pneg %p222
    %p229 = scmp.eq.s32.totalorder %s15, 1
    %p230 = por %p228, %p229
    %p231 = scmp.ne.s32.totalorder %s223, %s226
    %p232 = scmp.eq.s32.totalorder %s15, 0
    %p233 = por %p231, %p232
    %p234 = scmp.ne.s32.totalorder %s223, %s226
    %p235 = scmp.eq.s32.totalorder %s20, 1
    %p236 = por %p234, %p235
    %p237 = scmp.ne.s32.totalorder %s226, %s227
    %p238 = scmp.eq.s32.totalorder %s20, 0
    %p239 = por %p237, %p238
    %p240 = scmp.ne.s32.totalorder %s226, %s227
    %p241 = scmp.eq.s32.totalorder %s21, 1
    %p242 = por %p240, %p241
    %p244 = scmp.ne.s32.totalorder %s227, %s243
    %p245 = scmp.eq.s32.totalorder %s21, 0
    %p246 = por %p244, %p245
    %p247 = scmp.le.s32.totalorder 1, %s15
    %p248 = scmp.lt.s32.totalorder %s15, 3
    %p249 = pnand %p247, %p248
    %p250 = pneg %p249
    // Predicated region
    $region9: #{meta_learner_forward.1} parent=5 // pred_check
      _
    $region10: #{meta_learner_forward.1} parent=5 // pred_check_branch
      %252 = sbr.rel (%p249) target = $region12
    $region11: #{meta_learner_forward.1} parent=5 // pred_region
      %s253 = ssub.s32 %s15, 1
      // Predicated region
      $region13: #{meta_learner_forward.1} parent=11 // pred_check
        %p254 = pneg %p140
      $region14: #{meta_learner_forward.1} parent=11 // pred_check_branch
        %256 = sbr.rel (%p254) target = $region16
      $region15: #{meta_learner_forward.1} parent=11 // pred_region
        _
      $region16: #{meta_learner_forward.1} parent=11 // pred_fallthru
        _
      // Predicated region
      $region17: #{meta_learner_forward.1} parent=11 // pred_check
        %p257 = pneg %p161
      $region18: #{meta_learner_forward.1} parent=11 // pred_check_branch
        %259 = sbr.rel (%p257) target = $region20
      $region19: #{meta_learner_forward.1} parent=11 // pred_region
        _
      $region20: #{meta_learner_forward.1} parent=11 // pred_fallthru
        _
    $region12: #{meta_learner_forward.1} parent=5 // pred_fallthru
      _
    %p260 = scmp.lt.s32.totalorder %s15, 2
    // Predicated region
    $region21: #{meta_learner_forward.1} parent=5 // pred_check
      %p261 = pneg %p260
    $region22: #{meta_learner_forward.1} parent=5 // pred_check_branch
      %263 = sbr.rel (%p261) target = $region24
    $region23: #{meta_learner_forward.1} parent=5 // pred_region
      // Predicated region
      $region25: #{meta_learner_forward.1} parent=23 // pred_check
        %p264 = pneg %p35
      $region26: #{meta_learner_forward.1} parent=23 // pred_check_branch
        %266 = sbr.rel (%p264) target = $region28
      $region27: #{meta_learner_forward.1} parent=23 // pred_region
        %p267 = scmp.lt.s32.totalorder %s15, 1
        %s268 = scalar_select %p267, %s15, 1
        %s269 = smul.addr %s268, 8
        %s270 = scalar_lea.vmem %s0, %s269
      $region28: #{meta_learner_forward.1} parent=23 // pred_fallthru
        _
      // Predicated region
      $region29: #{meta_learner_forward.1} parent=23 // pred_check
        %p271 = pneg %p61
      $region30: #{meta_learner_forward.1} parent=23 // pred_check_branch
        %273 = sbr.rel (%p271) target = $region32
      $region31: #{meta_learner_forward.1} parent=23 // pred_region
        %p274 = scmp.lt.s32.totalorder %s15, 1
        %s275 = scalar_select %p274, %s15, 1
        %s276 = smul.addr %s275, 8
        %s277 = scalar_lea.vmem %s1, %s276
      $region32: #{meta_learner_forward.1} parent=23 // pred_fallthru
        _
      // Predicated region
      $region33: #{meta_learner_forward.1} parent=23 // pred_check
        %p278 = pneg %p87
      $region34: #{meta_learner_forward.1} parent=23 // pred_check_branch
        %280 = sbr.rel (%p278) target = $region36
      $region35: #{meta_learner_forward.1} parent=23 // pred_region
        %p281 = scmp.lt.s32.totalorder %s15, 1
        %s282 = scalar_select %p281, %s15, 1
        %s283 = smul.addr %s282, 8
        %s284 = scalar_lea.vmem %s2, %s283
      $region36: #{meta_learner_forward.1} parent=23 // pred_fallthru
        _
      // Predicated region
      $region37: #{meta_learner_forward.1} parent=23 // pred_check
        %p285 = pneg %p113
      $region38: #{meta_learner_forward.1} parent=23 // pred_check_branch
        %287 = sbr.rel (%p285) target = $region40
      $region39: #{meta_learner_forward.1} parent=23 // pred_region
        %p288 = scmp.lt.s32.totalorder %s15, 1
        %s289 = scalar_select %p288, %s15, 1
        %s290 = smul.addr %s289, 8
        %s291 = scalar_lea.vmem %s3, %s290
      $region40: #{meta_learner_forward.1} parent=23 // pred_fallthru
        _
    $region24: #{meta_learner_forward.1} parent=5 // pred_fallthru
      _
    %p292 = scmp.le.s32.totalorder 1, %s15
    %p293 = scmp.lt.s32.totalorder %s15, 3
    %p294 = pnand %p292, %p293
    %p295 = pneg %p294
    // Predicated region
    $region41: #{meta_learner_forward.1} parent=5 // pred_check
      _
    $region42: #{meta_learner_forward.1} parent=5 // pred_check_branch
      %297 = sbr.rel (%p294) target = $region44
    $region43: #{meta_learner_forward.1} parent=5 // pred_region
      %s298 = ssub.s32 %s15, 1
      %p299 = scmp.lt.s32.totalorder %s20, 1
      %s300 = scalar_select %p299, %s20, 1
      %s301 = smul.addr %s300, 8
      %s302 = scalar_lea.vmem %s0, %s301
      %p303 = pneg %p41
      %p304 = pneg %p38
      %p305 = scmp.lt.s32.totalorder %s20, 1
      %s306 = scalar_select %p305, %s20, 1
      %s307 = smul.addr %s306, 8
      %s308 = scalar_lea.vmem %s1, %s307
      %p309 = pneg %p67
      %p310 = pneg %p64
      %p311 = scmp.lt.s32.totalorder %s20, 1
      %s312 = scalar_select %p311, %s20, 1
      %s313 = smul.addr %s312, 8
      %s314 = scalar_lea.vmem %s2, %s313
      %p315 = pneg %p93
      %p316 = pneg %p90
      %p317 = scmp.lt.s32.totalorder %s20, 1
      %s318 = scalar_select %p317, %s20, 1
      %s319 = smul.addr %s318, 8
      %s320 = scalar_lea.vmem %s3, %s319
      %p321 = pneg %p119
      %p322 = pneg %p116
      %p323 = pneg %p140
      %p324 = pneg %p137
      %p325 = pneg %p161
      %p326 = pneg %p158
      %p327 = pneg %p187
      %p328 = pneg %p184
      %p329 = scmp.lt.s32.totalorder %s20, 1
      %s330 = scalar_select %p329, %s20, 1
      %s331 = smul.addr %s330, 4
      %s332 = scalar_lea.vmem %s6, %s331
      %p333 = pneg %p213
      %p334 = pneg %p210
      %p335 = scmp.lt.s32.totalorder %s20, 1
      %s336 = scalar_select %p335, %s20, 1
      %s337 = scalar_lea.vmem %s7, %s336
      %p338 = pneg %p239
      %p339 = pneg %p236
      %p340 = scmp.lt.s32.totalorder %s20, 1
      %s341 = scalar_select %p340, %s20, 1
      %s342 = scalar_lea.vmem %s8, %s341
      %p343 = scmp.lt.s32.totalorder %s20, 1
      %s344 = scalar_select %p343, %s20, 1
      %s345 = smul.addr %s344, 8
      %s346 = scalar_lea.vmem %s0, %s345
      %p347 = scmp.lt.s32.totalorder %s20, 1
      %s348 = scalar_select %p347, %s20, 1
      %s349 = smul.addr %s348, 8
      %s350 = scalar_lea.vmem %s1, %s349
      %p351 = scmp.lt.s32.totalorder %s20, 1
      %s352 = scalar_select %p351, %s20, 1
      %s353 = smul.addr %s352, 8
      %s354 = scalar_lea.vmem %s2, %s353
      %p355 = scmp.lt.s32.totalorder %s20, 1
      %s356 = scalar_select %p355, %s20, 1
      %s357 = smul.addr %s356, 8
      %s358 = scalar_lea.vmem %s3, %s357
      %p359 = scmp.lt.s32.totalorder %s20, 1
      %s360 = scalar_select %p359, %s20, 1
      %s361 = smul.addr %s360, 4
      %s362 = scalar_lea.vmem %s6, %s361
      %p363 = scmp.lt.s32.totalorder %s20, 1
      %s364 = scalar_select %p363, %s20, 1
      %s365 = scalar_lea.vmem %s7, %s364
      %p366 = scmp.lt.s32.totalorder %s20, 1
      %s367 = scalar_select %p366, %s20, 1
      %s368 = scalar_lea.vmem %s8, %s367
      %v369 = vld [vmem:[%s4] sm:$0xf]
      %370 = vst [vmem:[#allocation2] sm:$0xf] %v369
      %v371 = vld [vmem:[%s5] sm:$0x1]
      %vm372 = vcmask 24576
      %373 = vst.msk [vmem:[#allocation3] sm:$0x1] %vm372, %v371
      %v374 = vld [vmem:[%s346] sm:$0xff]
      %v375 = vld [vmem:[%s350] sm:$0xff]
      %v376 = vlaneseq
      %v377 = vand.u32 %v376, 127
      %378 = vset.pattern.permute.xlu0 0
      %379 = vperm.xlu0 %378, %v375
      %v380 = vpop.permute.xlu0 %379
      %vm381 = vcmp.eq.s32.totalorder %v380, %v377
      %v382 = vsel %vm381, 1, 0
      %v383 = vcvt.s32.f32 %v382
      %v384 = vld [vmem:[#allocation2] sm:$0xf]
      %v385 = vld [vmem:[#allocation3] sm:$0x1]
      %v387 = vlaneseq
      %v388 = vshrl.u32 %v387, 7
      %v389 = vsub.s32 0, %v388
      %v390 = vrot.slane %v385, %v389
      %392 = vmatprep.subr.mxu0 0.0
      %393 = vmatpush1.xpose.msra.mxu0 0.0
      %394 = vmatprep.subr.mxu0 0.0
      %395 = vmatpush1.xpose.msra.mxu0 0.0
      %396 = vmatprep.subr.mxu0 0.0
      %397 = vmatpush1.xpose.msra.mxu0 0.0
      %398 = vmatprep.subr.mxu0 0.0
      %399 = vmatpush1.xpose.msra.mxu0 0.0
      %400 = vmatprep.subr.mxu0 0.0
      %401 = vmatpush1.xpose.msra.mxu0 0.0
      %402 = vmatprep.subr.mxu0 0.0
      %403 = vmatpush1.xpose.msra.mxu0 0.0
      %404 = vmatprep.subr.mxu0 0.0
      %405 = vmatpush1.xpose.msra.mxu0 0.0
      %406 = vmatprep.subr.mxu0 0.0
      %407 = vmatpush1.xpose.msra.mxu0 0.0
      %408 = vmatprep.subr.mxu0 0.0
      %409 = vmatpush1.xpose.msra.mxu0 0.0
      %410 = vmatprep.subr.mxu0 0.0
      %411 = vmatpush1.xpose.msra.mxu0 0.0
      %412 = vmatprep.subr.mxu0 0.0
      %413 = vmatpush1.xpose.msra.mxu0 0.0
      %414 = vmatprep.subr.mxu0 0.0
      %415 = vmatpush1.xpose.msra.mxu0 0.0
      %416 = vmatprep.subr.mxu0 0.0
      %417 = vmatpush1.xpose.msra.mxu0 0.0
      %418 = vmatprep.subr.mxu0 0.0
      %419 = vmatpush1.xpose.msra.mxu0 0.0
      %420 = vmatprep.subr.mxu0 0.0
      %421 = vmatpush1.xpose.msra.mxu0 0.0
      %422 = vmatprep.subr.mxu0 0.0
      %423 = vmatpush1.xpose.msra.mxu0 %v384
      %424 = vmatprep.subr.mxu0 0.0
      %425 = vmatpush2.xpose.msra.mxu0 0.0
      %426 = vmatprep.subr.mxu0 0.0
      %427 = vmatpush2.xpose.msra.mxu0 0.0
      %428 = vmatprep.subr.mxu0 0.0
      %429 = vmatpush2.xpose.msra.mxu0 0.0
      %430 = vmatprep.subr.mxu0 0.0
      %431 = vmatpush2.xpose.msra.mxu0 0.0
      %432 = vmatprep.subr.mxu0 0.0
      %433 = vmatpush2.xpose.msra.mxu0 0.0
      %434 = vmatprep.subr.mxu0 0.0
      %435 = vmatpush2.xpose.msra.mxu0 0.0
      %436 = vmatprep.subr.mxu0 0.0
      %437 = vmatpush2.xpose.msra.mxu0 0.0
      %438 = vmatprep.subr.mxu0 0.0
      %439 = vmatpush2.xpose.msra.mxu0 0.0
      %440 = vmatprep.subr.mxu0 0.0
      %441 = vmatpush2.xpose.msra.mxu0 0.0
      %442 = vmatprep.subr.mxu0 0.0
      %443 = vmatpush2.xpose.msra.mxu0 0.0
      %444 = vmatprep.subr.mxu0 0.0
      %445 = vmatpush2.xpose.msra.mxu0 0.0
      %446 = vmatprep.subr.mxu0 0.0
      %447 = vmatpush2.xpose.msra.mxu0 0.0
      %448 = vmatprep.subr.mxu0 0.0
      %449 = vmatpush2.xpose.msra.mxu0 0.0
      %450 = vmatprep.subr.mxu0 0.0
      %451 = vmatpush2.xpose.msra.mxu0 0.0
      %452 = vmatprep.subr.mxu0 0.0
      %453 = vmatpush2.xpose.msra.mxu0 0.0
      %454 = vmatprep.subr.mxu0 0.0
      %455 = vmatpush2.xpose.msra.mxu0 0.0
      %456 = vmatprep.mubr.f32.mxu0 0.0
      %457 = vmatmul.mubr.f32.gmra.mxu0 %v374
      %v458 = vpop.f32.mrf.mxu0
      %v459 = vadd.f32 %v390, %v458
      %v460 = vpop.f32.mrf.mxu0
      %461 = vdwg.mxu0
      %vm462 = vcmask 31744
      %v463 = vsel %vm462, %v459, -inf
      %464 = vmax.xlane.f32.xlu0 %v463
      %v465 = vpop.xlane.xlu0 %464
      %v466 = vsub.f32 %v459, %v465
      %v467 = vmul.f32 %v466, 1.442695
      %v468 = vpow.pop %v467
      %v469 = vsel %vm462, %v468, 0.0
      %470 = vadd.xlane.f32.xlu0 %v469
      %v471 = vpop.xlane.xlu0 %470
      %v472 = vrcp.pop %v471
      %v473 = vmul.f32 %v468, %v472
      %v474 = vsub.f32 %v473, %v383
      %v475 = vmul.f32 %v474, 0.125
      %476 = vxpose.xlu0.b32.start [1/16] %v475, 128
      %477 = vxpose.xlu0.b32.cont [2/16] 0.0, 128
      %478 = vxpose.xlu0.b32.cont [3/16] 0.0, 128
      %479 = vxpose.xlu0.b32.cont [4/16] 0.0, 128
      %480 = vxpose.xlu0.b32.cont [5/16] 0.0, 128
      %481 = vxpose.xlu0.b32.cont [6/16] 0.0, 128
      %482 = vxpose.xlu0.b32.cont [7/16] 0.0, 128
      %483 = vxpose.xlu0.b32.cont [8/16] 0.0, 128
      %484 = vxpose.xlu0.b32.cont [9/16] 0.0, 128
      %485 = vxpose.xlu0.b32.cont [10/16] 0.0, 128
      %486 = vxpose.xlu0.b32.cont [11/16] 0.0, 128
      %487 = vxpose.xlu0.b32.cont [12/16] 0.0, 128
      %488 = vxpose.xlu0.b32.cont [13/16] 0.0, 128
      %489 = vxpose.xlu0.b32.cont [14/16] 0.0, 128
      %490 = vxpose.xlu0.b32.cont [15/16] 0.0, 128
      %491 = vxpose.xlu0.b32.end [16/16] 0.0, 128
      %v492 = vpop.trf.xlu0
      %v493 = vpop.trf.xlu0
      %v494 = vpop.trf.xlu0
      %v495 = vpop.trf.xlu0
      %v496 = vpop.trf.xlu0
      %v497 = vpop.trf.xlu0
      %v498 = vpop.trf.xlu0
      %v499 = vpop.trf.xlu0
      %v500 = vpop.trf.xlu0
      %v501 = vpop.trf.xlu0
      %v502 = vpop.trf.xlu0
      %v503 = vpop.trf.xlu0
      %v504 = vpop.trf.xlu0
      %v505 = vpop.trf.xlu0
      %v506 = vpop.trf.xlu0
      %v507 = vpop.trf.xlu0
      %vm508 = vcmask 64512
      %v510 = vsel %vm508, %v492, 0
      %512 = vmatprep.subr.mxu0 0.0
      %513 = vmatpush1.msra.mxu0 0.0
      %514 = vmatprep.subr.mxu0 0.0
      %515 = vmatpush1.msra.mxu0 0.0
      %516 = vmatprep.subr.mxu0 0.0
      %517 = vmatpush1.msra.mxu0 0.0
      %518 = vmatprep.subr.mxu0 0.0
      %519 = vmatpush1.msra.mxu0 0.0
      %520 = vmatprep.subr.mxu0 0.0
      %521 = vmatpush1.msra.mxu0 0.0
      %522 = vmatprep.subr.mxu0 0.0
      %523 = vmatpush1.msra.mxu0 0.0
      %524 = vmatprep.subr.mxu0 0.0
      %525 = vmatpush1.msra.mxu0 0.0
      %526 = vmatprep.subr.mxu0 0.0
      %527 = vmatpush1.msra.mxu0 0.0
      %528 = vmatprep.subr.mxu0 0.0
      %529 = vmatpush1.msra.mxu0 0.0
      %530 = vmatprep.subr.mxu0 0.0
      %531 = vmatpush1.msra.mxu0 0.0
      %532 = vmatprep.subr.mxu0 0.0
      %533 = vmatpush1.msra.mxu0 0.0
      %534 = vmatprep.subr.mxu0 0.0
      %535 = vmatpush1.msra.mxu0 0.0
      %536 = vmatprep.subr.mxu0 0.0
      %537 = vmatpush1.msra.mxu0 0.0
      %538 = vmatprep.subr.mxu0 0.0
      %539 = vmatpush1.msra.mxu0 0.0
      %540 = vmatprep.subr.mxu0 0.0
      %541 = vmatpush1.msra.mxu0 0.0
      %542 = vmatprep.subr.mxu0 0.0
      %543 = vmatpush1.msra.mxu0 %v374
      %544 = vmatprep.subr.mxu0 0.0
      %545 = vmatpush2.msra.mxu0 0.0
      %546 = vmatprep.subr.mxu0 0.0
      %547 = vmatpush2.msra.mxu0 0.0
      %548 = vmatprep.subr.mxu0 0.0
      %549 = vmatpush2.msra.mxu0 0.0
      %550 = vmatprep.subr.mxu0 0.0
      %551 = vmatpush2.msra.mxu0 0.0
      %552 = vmatprep.subr.mxu0 0.0
      %553 = vmatpush2.msra.mxu0 0.0
      %554 = vmatprep.subr.mxu0 0.0
      %555 = vmatpush2.msra.mxu0 0.0
      %556 = vmatprep.subr.mxu0 0.0
      %557 = vmatpush2.msra.mxu0 0.0
      %558 = vmatprep.subr.mxu0 0.0
      %559 = vmatpush2.msra.mxu0 0.0
      %560 = vmatprep.subr.mxu0 0.0
      %561 = vmatpush2.msra.mxu0 0.0
      %562 = vmatprep.subr.mxu0 0.0
      %563 = vmatpush2.msra.mxu0 0.0
      %564 = vmatprep.subr.mxu0 0.0
      %565 = vmatpush2.msra.mxu0 0.0
      %566 = vmatprep.subr.mxu0 0.0
      %567 = vmatpush2.msra.mxu0 0.0
      %568 = vmatprep.subr.mxu0 0.0
      %569 = vmatpush2.msra.mxu0 0.0
      %570 = vmatprep.subr.mxu0 0.0
      %571 = vmatpush2.msra.mxu0 0.0
      %572 = vmatprep.subr.mxu0 0.0
      %573 = vmatpush2.msra.mxu0 0.0
      %574 = vmatprep.subr.mxu0 0.0
      %575 = vmatpush2.msra.mxu0 0.0
      %576 = vmatprep.mubr.f32.mxu0 0.0
      %577 = vmatmul.mubr.f32.gmra.mxu0 %v510
      %v578 = vpop.f32.mrf.mxu0
      %v579 = vadd.f32 0.0, %v578
      %v580 = vpop.f32.mrf.mxu0
      %581 = vdwg.mxu0
      %v582 = vsel %vm462, %v475, 0.0
      %v583 = vrot.slane %v582, 4
      %v584 = vadd.f32 %v582, %v583
      %v585 = vrot.slane %v584, 2
      %v586 = vadd.f32 %v584, %v585
      %v587 = vrot.slane %v586, 1
      %v588 = vadd.f32 %v586, %v587
      %v589 = vmul.f32 %v579, 0.01
      %v590 = vsub.f32 %v384, %v589
      %591 = vst [vmem:[#allocation2] sm:$0xf] %v590
      %v592 = vld [vmem:[#allocation3] sm:$0x1]
      %v593 = vmul.f32 %v588, 0.01
      %v594 = vsub.f32 %v592, %v593
      %595 = vst.msk [vmem:[#allocation3] sm:$0x1] %vm372, %v594
      %v596 = vld [vmem:[#allocation2] sm:$0xf]
      %v597 = vld [vmem:[#allocation3] sm:$0x1]
      %v599 = vlaneseq
      %v600 = vshrl.u32 %v599, 7
      %v601 = vsub.s32 0, %v600
      %v602 = vrot.slane %v597, %v601
      %604 = vmatprep.subr.mxu0 0.0
      %605 = vmatpush1.xpose.msra.mxu0 0.0
      %606 = vmatprep.subr.mxu0 0.0
      %607 = vmatpush1.xpose.msra.mxu0 0.0
      %608 = vmatprep.subr.mxu0 0.0
      %609 = vmatpush1.xpose.msra.mxu0 0.0
      %610 = vmatprep.subr.mxu0 0.0
      %611 = vmatpush1.xpose.msra.mxu0 0.0
      %612 = vmatprep.subr.mxu0 0.0
      %613 = vmatpush1.xpose.msra.mxu0 0.0
      %614 = vmatprep.subr.mxu0 0.0
      %615 = vmatpush1.xpose.msra.mxu0 0.0
      %616 = vmatprep.subr.mxu0 0.0
      %617 = vmatpush1.xpose.msra.mxu0 0.0
      %618 = vmatprep.subr.mxu0 0.0
      %619 = vmatpush1.xpose.msra.mxu0 0.0
      %620 = vmatprep.subr.mxu0 0.0
      %621 = vmatpush1.xpose.msra.mxu0 0.0
      %622 = vmatprep.subr.mxu0 0.0
      %623 = vmatpush1.xpose.msra.mxu0 0.0
      %624 = vmatprep.subr.mxu0 0.0
      %625 = vmatpush1.xpose.msra.mxu0 0.0
      %626 = vmatprep.subr.mxu0 0.0
      %627 = vmatpush1.xpose.msra.mxu0 0.0
      %628 = vmatprep.subr.mxu0 0.0
      %629 = vmatpush1.xpose.msra.mxu0 0.0
      %630 = vmatprep.subr.mxu0 0.0
      %631 = vmatpush1.xpose.msra.mxu0 0.0
      %632 = vmatprep.subr.mxu0 0.0
      %633 = vmatpush1.xpose.msra.mxu0 0.0
      %634 = vmatprep.subr.mxu0 0.0
      %635 = vmatpush1.xpose.msra.mxu0 %v596
      %636 = vmatprep.subr.mxu0 0.0
      %637 = vmatpush2.xpose.msra.mxu0 0.0
      %638 = vmatprep.subr.mxu0 0.0
      %639 = vmatpush2.xpose.msra.mxu0 0.0
      %640 = vmatprep.subr.mxu0 0.0
      %641 = vmatpush2.xpose.msra.mxu0 0.0
      %642 = vmatprep.subr.mxu0 0.0
      %643 = vmatpush2.xpose.msra.mxu0 0.0
      %644 = vmatprep.subr.mxu0 0.0
      %645 = vmatpush2.xpose.msra.mxu0 0.0
      %646 = vmatprep.subr.mxu0 0.0
      %647 = vmatpush2.xpose.msra.mxu0 0.0
      %648 = vmatprep.subr.mxu0 0.0
      %649 = vmatpush2.xpose.msra.mxu0 0.0
      %650 = vmatprep.subr.mxu0 0.0
      %651 = vmatpush2.xpose.msra.mxu0 0.0
      %652 = vmatprep.subr.mxu0 0.0
      %653 = vmatpush2.xpose.msra.mxu0 0.0
      %654 = vmatprep.subr.mxu0 0.0
      %655 = vmatpush2.xpose.msra.mxu0 0.0
      %656 = vmatprep.subr.mxu0 0.0
      %657 = vmatpush2.xpose.msra.mxu0 0.0
      %658 = vmatprep.subr.mxu0 0.0
      %659 = vmatpush2.xpose.msra.mxu0 0.0
      %660 = vmatprep.subr.mxu0 0.0
      %661 = vmatpush2.xpose.msra.mxu0 0.0
      %662 = vmatprep.subr.mxu0 0.0
      %663 = vmatpush2.xpose.msra.mxu0 0.0
      %664 = vmatprep.subr.mxu0 0.0
      %665 = vmatpush2.xpose.msra.mxu0 0.0
      %666 = vmatprep.subr.mxu0 0.0
      %667 = vmatpush2.xpose.msra.mxu0 0.0
      %668 = vmatprep.mubr.f32.mxu0 0.0
      %669 = vmatmul.mubr.f32.gmra.mxu0 %v374
      %v670 = vpop.f32.mrf.mxu0
      %v671 = vadd.f32 %v602, %v670
      %v672 = vpop.f32.mrf.mxu0
      %673 = vdwg.mxu0
      %v674 = vsel %vm462, %v671, -inf
      %675 = vmax.xlane.f32.xlu0 %v674
      %v676 = vpop.xlane.xlu0 %675
      %v677 = vsub.f32 %v671, %v676
      %v678 = vmul.f32 %v677, 1.442695
      %v679 = vpow.pop %v678
      %v680 = vsel %vm462, %v679, 0.0
      %681 = vadd.xlane.f32.xlu0 %v680
      %v682 = vpop.xlane.xlu0 %681
      %v683 = vrcp.pop %v682
      %v684 = vmul.f32 %v679, %v683
      %v685 = vsub.f32 %v684, %v383
      %v686 = vmul.f32 %v685, 0.125
      %687 = vxpose.xlu0.b32.start [1/16] %v686, 128
      %688 = vxpose.xlu0.b32.cont [2/16] 0.0, 128
      %689 = vxpose.xlu0.b32.cont [3/16] 0.0, 128
      %690 = vxpose.xlu0.b32.cont [4/16] 0.0, 128
      %691 = vxpose.xlu0.b32.cont [5/16] 0.0, 128
      %692 = vxpose.xlu0.b32.cont [6/16] 0.0, 128
      %693 = vxpose.xlu0.b32.cont [7/16] 0.0, 128
      %694 = vxpose.xlu0.b32.cont [8/16] 0.0, 128
      %695 = vxpose.xlu0.b32.cont [9/16] 0.0, 128
      %696 = vxpose.xlu0.b32.cont [10/16] 0.0, 128
      %697 = vxpose.xlu0.b32.cont [11/16] 0.0, 128
      %698 = vxpose.xlu0.b32.cont [12/16] 0.0, 128
      %699 = vxpose.xlu0.b32.cont [13/16] 0.0, 128
      %700 = vxpose.xlu0.b32.cont [14/16] 0.0, 128
      %701 = vxpose.xlu0.b32.cont [15/16] 0.0, 128
      %702 = vxpose.xlu0.b32.end [16/16] 0.0, 128
      %v703 = vpop.trf.xlu0
      %v704 = vpop.trf.xlu0
      %v705 = vpop.trf.xlu0
      %v706 = vpop.trf.xlu0
      %v707 = vpop.trf.xlu0
      %v708 = vpop.trf.xlu0
      %v709 = vpop.trf.xlu0
      %v710 = vpop.trf.xlu0
      %v711 = vpop.trf.xlu0
      %v712 = vpop.trf.xlu0
      %v713 = vpop.trf.xlu0
      %v714 = vpop.trf.xlu0
      %v715 = vpop.trf.xlu0
      %v716 = vpop.trf.xlu0
      %v717 = vpop.trf.xlu0
      %v718 = vpop.trf.xlu0
      %v720 = vsel %vm508, %v703, 0
      %722 = vmatprep.subr.mxu0 0.0
      %723 = vmatpush1.msra.mxu0 0.0
      %724 = vmatprep.subr.mxu0 0.0
      %725 = vmatpush1.msra.mxu0 0.0
      %726 = vmatprep.subr.mxu0 0.0
      %727 = vmatpush1.msra.mxu0 0.0
      %728 = vmatprep.subr.mxu0 0.0
      %729 = vmatpush1.msra.mxu0 0.0
      %730 = vmatprep.subr.mxu0 0.0
      %731 = vmatpush1.msra.mxu0 0.0
      %732 = vmatprep.subr.mxu0 0.0
      %733 = vmatpush1.msra.mxu0 0.0
      %734 = vmatprep.subr.mxu0 0.0
      %735 = vmatpush1.msra.mxu0 0.0
      %736 = vmatprep.subr.mxu0 0.0
      %737 = vmatpush1.msra.mxu0 0.0
      %738 = vmatprep.subr.mxu0 0.0
      %739 = vmatpush1.msra.mxu0 0.0
      %740 = vmatprep.subr.mxu0 0.0
      %741 = vmatpush1.msra.mxu0 0.0
      %742 = vmatprep.subr.mxu0 0.0
      %743 = vmatpush1.msra.mxu0 0.0
      %744 = vmatprep.subr.mxu0 0.0
      %745 = vmatpush1.msra.mxu0 0.0
      %746 = vmatprep.subr.mxu0 0.0
      %747 = vmatpush1.msra.mxu0 0.0
      %748 = vmatprep.subr.mxu0 0.0
      %749 = vmatpush1.msra.mxu0 0.0
      %750 = vmatprep.subr.mxu0 0.0
      %751 = vmatpush1.msra.mxu0 0.0
      %752 = vmatprep.subr.mxu0 0.0
      %753 = vmatpush1.msra.mxu0 %v374
      %754 = vmatprep.subr.mxu0 0.0
      %755 = vmatpush2.msra.mxu0 0.0
      %756 = vmatprep.subr.mxu0 0.0
      %757 = vmatpush2.msra.mxu0 0.0
      %758 = vmatprep.subr.mxu0 0.0
      %759 = vmatpush2.msra.mxu0 0.0
      %760 = vmatprep.subr.mxu0 0.0
      %761 = vmatpush2.msra.mxu0 0.0
      %762 = vmatprep.subr.mxu0 0.0
      %763 = vmatpush2.msra.mxu0 0.0
      %764 = vmatprep.subr.mxu0 0.0
      %765 = vmatpush2.msra.mxu0 0.0
      %766 = vmatprep.subr.mxu0 0.0
      %767 = vmatpush2.msra.mxu0 0.0
      %768 = vmatprep.subr.mxu0 0.0
      %769 = vmatpush2.msra.mxu0 0.0
      %770 = vmatprep.subr.mxu0 0.0
      %771 = vmatpush2.msra.mxu0 0.0
      %772 = vmatprep.subr.mxu0 0.0
      %773 = vmatpush2.msra.mxu0 0.0
      %774 = vmatprep.subr.mxu0 0.0
      %775 = vmatpush2.msra.mxu0 0.0
      %776 = vmatprep.subr.mxu0 0.0
      %777 = vmatpush2.msra.mxu0 0.0
      %778 = vmatprep.subr.mxu0 0.0
      %779 = vmatpush2.msra.mxu0 0.0
      %780 = vmatprep.subr.mxu0 0.0
      %781 = vmatpush2.msra.mxu0 0.0
      %782 = vmatprep.subr.mxu0 0.0
      %783 = vmatpush2.msra.mxu0 0.0
      %784 = vmatprep.subr.mxu0 0.0
      %785 = vmatpush2.msra.mxu0 0.0
      %786 = vmatprep.mubr.f32.mxu0 0.0
      %787 = vmatmul.mubr.f32.gmra.mxu0 %v720
      %v788 = vpop.f32.mrf.mxu0
      %v789 = vadd.f32 0.0, %v788
      %v790 = vpop.f32.mrf.mxu0
      %791 = vdwg.mxu0
      %v792 = vsel %vm462, %v686, 0.0
      %v793 = vrot.slane %v792, 4
      %v794 = vadd.f32 %v792, %v793
      %v795 = vrot.slane %v794, 2
      %v796 = vadd.f32 %v794, %v795
      %v797 = vrot.slane %v796, 1
      %v798 = vadd.f32 %v796, %v797
      %v799 = vmul.f32 %v789, 0.01
      %v800 = vsub.f32 %v596, %v799
      %801 = vst [vmem:[#allocation2] sm:$0xf] %v800
      %v802 = vld [vmem:[#allocation3] sm:$0x1]
      %v803 = vmul.f32 %v798, 0.01
      %v804 = vsub.f32 %v802, %v803
      %805 = vst.msk [vmem:[#allocation3] sm:$0x1] %vm372, %v804
      %v806 = vld [vmem:[%s354] sm:$0xff]
      %v807 = vld [vmem:[%s358] sm:$0xff]
      %808 = vset.pattern.permute.xlu0 0
      %809 = vperm.xlu0 %808, %v807
      %v810 = vpop.permute.xlu0 %809
      %vm811 = vcmp.eq.s32.totalorder %v810, %v377
      %v812 = vsel %vm811, 1, 0
      %v813 = vcvt.s32.f32 %v812
      %v814 = vld [vmem:[#allocation2] sm:$0xf]
      %v815 = vld [vmem:[#allocation3] sm:$0x1]
      %v817 = vlaneseq
      %v818 = vshrl.u32 %v817, 7
      %v819 = vsub.s32 0, %v818
      %v820 = vrot.slane %v815, %v819
      %822 = vmatprep.subr.mxu0 0.0
      %823 = vmatpush1.xpose.msra.mxu0 0.0
      %824 = vmatprep.subr.mxu0 0.0
      %825 = vmatpush1.xpose.msra.mxu0 0.0
      %826 = vmatprep.subr.mxu0 0.0
      %827 = vmatpush1.xpose.msra.mxu0 0.0
      %828 = vmatprep.subr.mxu0 0.0
      %829 = vmatpush1.xpose.msra.mxu0 0.0
      %830 = vmatprep.subr.mxu0 0.0
      %831 = vmatpush1.xpose.msra.mxu0 0.0
      %832 = vmatprep.subr.mxu0 0.0
      %833 = vmatpush1.xpose.msra.mxu0 0.0
      %834 = vmatprep.subr.mxu0 0.0
      %835 = vmatpush1.xpose.msra.mxu0 0.0
      %836 = vmatprep.subr.mxu0 0.0
      %837 = vmatpush1.xpose.msra.mxu0 0.0
      %838 = vmatprep.subr.mxu0 0.0
      %839 = vmatpush1.xpose.msra.mxu0 0.0
      %840 = vmatprep.subr.mxu0 0.0
      %841 = vmatpush1.xpose.msra.mxu0 0.0
      %842 = vmatprep.subr.mxu0 0.0
      %843 = vmatpush1.xpose.msra.mxu0 0.0
      %844 = vmatprep.subr.mxu0 0.0
      %845 = vmatpush1.xpose.msra.mxu0 0.0
      %846 = vmatprep.subr.mxu0 0.0
      %847 = vmatpush1.xpose.msra.mxu0 0.0
      %848 = vmatprep.subr.mxu0 0.0
      %849 = vmatpush1.xpose.msra.mxu0 0.0
      %850 = vmatprep.subr.mxu0 0.0
      %851 = vmatpush1.xpose.msra.mxu0 0.0
      %852 = vmatprep.subr.mxu0 0.0
      %853 = vmatpush1.xpose.msra.mxu0 %v814
      %854 = vmatprep.subr.mxu0 0.0
      %855 = vmatpush2.xpose.msra.mxu0 0.0
      %856 = vmatprep.subr.mxu0 0.0
      %857 = vmatpush2.xpose.msra.mxu0 0.0
      %858 = vmatprep.subr.mxu0 0.0
      %859 = vmatpush2.xpose.msra.mxu0 0.0
      %860 = vmatprep.subr.mxu0 0.0
      %861 = vmatpush2.xpose.msra.mxu0 0.0
      %862 = vmatprep.subr.mxu0 0.0
      %863 = vmatpush2.xpose.msra.mxu0 0.0
      %864 = vmatprep.subr.mxu0 0.0
      %865 = vmatpush2.xpose.msra.mxu0 0.0
      %866 = vmatprep.subr.mxu0 0.0
      %867 = vmatpush2.xpose.msra.mxu0 0.0
      %868 = vmatprep.subr.mxu0 0.0
      %869 = vmatpush2.xpose.msra.mxu0 0.0
      %870 = vmatprep.subr.mxu0 0.0
      %871 = vmatpush2.xpose.msra.mxu0 0.0
      %872 = vmatprep.subr.mxu0 0.0
      %873 = vmatpush2.xpose.msra.mxu0 0.0
      %874 = vmatprep.subr.mxu0 0.0
      %875 = vmatpush2.xpose.msra.mxu0 0.0
      %876 = vmatprep.subr.mxu0 0.0
      %877 = vmatpush2.xpose.msra.mxu0 0.0
      %878 = vmatprep.subr.mxu0 0.0
      %879 = vmatpush2.xpose.msra.mxu0 0.0
      %880 = vmatprep.subr.mxu0 0.0
      %881 = vmatpush2.xpose.msra.mxu0 0.0
      %882 = vmatprep.subr.mxu0 0.0
      %883 = vmatpush2.xpose.msra.mxu0 0.0
      %884 = vmatprep.subr.mxu0 0.0
      %885 = vmatpush2.xpose.msra.mxu0 0.0
      %886 = vmatprep.mubr.f32.mxu0 0.0
      %887 = vmatmul.mubr.f32.gmra.mxu0 %v806
      %v888 = vpop.f32.mrf.mxu0
      %v889 = vadd.f32 %v820, %v888
      %v890 = vpop.f32.mrf.mxu0
      %891 = vdwg.mxu0
      %v892 = vsel %vm462, %v889, -inf
      %893 = vmax.xlane.f32.xlu0 %v892
      %v894 = vpop.xlane.xlu0 %893
      %v895 = vsub.f32 %v889, %v894
      %v896 = vmul.f32 %v895, 1.442695
      %v897 = vpow.pop %v896
      %v898 = vsel %vm462, %v897, 0.0
      %899 = vadd.xlane.f32.xlu0 %v898
      %v900 = vpop.xlane.xlu0 %899
      %v901 = vrcp.pop %v900
      %v902 = vmul.f32 %v897, %v901
      %v903 = vsub.f32 %v902, %v813
      %v904 = vmul.f32 %v903, 0.125
      %905 = vxpose.xlu0.b32.start [1/16] %v904, 128
      %906 = vxpose.xlu0.b32.cont [2/16] 0.0, 128
      %907 = vxpose.xlu0.b32.cont [3/16] 0.0, 128
      %908 = vxpose.xlu0.b32.cont [4/16] 0.0, 128
      %909 = vxpose.xlu0.b32.cont [5/16] 0.0, 128
      %910 = vxpose.xlu0.b32.cont [6/16] 0.0, 128
      %911 = vxpose.xlu0.b32.cont [7/16] 0.0, 128
      %912 = vxpose.xlu0.b32.cont [8/16] 0.0, 128
      %913 = vxpose.xlu0.b32.cont [9/16] 0.0, 128
      %914 = vxpose.xlu0.b32.cont [10/16] 0.0, 128
      %915 = vxpose.xlu0.b32.cont [11/16] 0.0, 128
      %916 = vxpose.xlu0.b32.cont [12/16] 0.0, 128
      %917 = vxpose.xlu0.b32.cont [13/16] 0.0, 128
      %918 = vxpose.xlu0.b32.cont [14/16] 0.0, 128
      %919 = vxpose.xlu0.b32.cont [15/16] 0.0, 128
      %920 = vxpose.xlu0.b32.end [16/16] 0.0, 128
      %v921 = vpop.trf.xlu0
      %v922 = vpop.trf.xlu0
      %v923 = vpop.trf.xlu0
      %v924 = vpop.trf.xlu0
      %v925 = vpop.trf.xlu0
      %v926 = vpop.trf.xlu0
      %v927 = vpop.trf.xlu0
      %v928 = vpop.trf.xlu0
      %v929 = vpop.trf.xlu0
      %v930 = vpop.trf.xlu0
      %v931 = vpop.trf.xlu0
      %v932 = vpop.trf.xlu0
      %v933 = vpop.trf.xlu0
      %v934 = vpop.trf.xlu0
      %v935 = vpop.trf.xlu0
      %v936 = vpop.trf.xlu0
      %v938 = vsel %vm508, %v921, 0
      %940 = vmatprep.subr.mxu0 0.0
      %941 = vmatpush1.msra.mxu0 0.0
      %942 = vmatprep.subr.mxu0 0.0
      %943 = vmatpush1.msra.mxu0 0.0
      %944 = vmatprep.subr.mxu0 0.0
      %945 = vmatpush1.msra.mxu0 0.0
      %946 = vmatprep.subr.mxu0 0.0
      %947 = vmatpush1.msra.mxu0 0.0
      %948 = vmatprep.subr.mxu0 0.0
      %949 = vmatpush1.msra.mxu0 0.0
      %950 = vmatprep.subr.mxu0 0.0
      %951 = vmatpush1.msra.mxu0 0.0
      %952 = vmatprep.subr.mxu0 0.0
      %953 = vmatpush1.msra.mxu0 0.0
      %954 = vmatprep.subr.mxu0 0.0
      %955 = vmatpush1.msra.mxu0 0.0
      %956 = vmatprep.subr.mxu0 0.0
      %957 = vmatpush1.msra.mxu0 0.0
      %958 = vmatprep.subr.mxu0 0.0
      %959 = vmatpush1.msra.mxu0 0.0
      %960 = vmatprep.subr.mxu0 0.0
      %961 = vmatpush1.msra.mxu0 0.0
      %962 = vmatprep.subr.mxu0 0.0
      %963 = vmatpush1.msra.mxu0 0.0
      %964 = vmatprep.subr.mxu0 0.0
      %965 = vmatpush1.msra.mxu0 0.0
      %966 = vmatprep.subr.mxu0 0.0
      %967 = vmatpush1.msra.mxu0 0.0
      %968 = vmatprep.subr.mxu0 0.0
      %969 = vmatpush1.msra.mxu0 0.0
      %970 = vmatprep.subr.mxu0 0.0
      %971 = vmatpush1.msra.mxu0 %v806
      %972 = vmatprep.subr.mxu0 0.0
      %973 = vmatpush2.msra.mxu0 0.0
      %974 = vmatprep.subr.mxu0 0.0
      %975 = vmatpush2.msra.mxu0 0.0
      %976 = vmatprep.subr.mxu0 0.0
      %977 = vmatpush2.msra.mxu0 0.0
      %978 = vmatprep.subr.mxu0 0.0
      %979 = vmatpush2.msra.mxu0 0.0
      %980 = vmatprep.subr.mxu0 0.0
      %981 = vmatpush2.msra.mxu0 0.0
      %982 = vmatprep.subr.mxu0 0.0
      %983 = vmatpush2.msra.mxu0 0.0
      %984 = vmatprep.subr.mxu0 0.0
      %985 = vmatpush2.msra.mxu0 0.0
      %986 = vmatprep.subr.mxu0 0.0
      %987 = vmatpush2.msra.mxu0 0.0
      %988 = vmatprep.subr.mxu0 0.0
      %989 = vmatpush2.msra.mxu0 0.0
      %990 = vmatprep.subr.mxu0 0.0
      %991 = vmatpush2.msra.mxu0 0.0
      %992 = vmatprep.subr.mxu0 0.0
      %993 = vmatpush2.msra.mxu0 0.0
      %994 = vmatprep.subr.mxu0 0.0
      %995 = vmatpush2.msra.mxu0 0.0
      %996 = vmatprep.subr.mxu0 0.0
      %997 = vmatpush2.msra.mxu0 0.0
      %998 = vmatprep.subr.mxu0 0.0
      %999 = vmatpush2.msra.mxu0 0.0
      %1000 = vmatprep.subr.mxu0 0.0
      %1001 = vmatpush2.msra.mxu0 0.0
      %1002 = vmatprep.subr.mxu0 0.0
      %1003 = vmatpush2.msra.mxu0 0.0
      %1004 = vmatprep.mubr.f32.mxu0 0.0
      %1005 = vmatmul.mubr.f32.gmra.mxu0 %v938
      %v1006 = vpop.f32.mrf.mxu0
      %v1007 = vadd.f32 0.0, %v1006
      %v1008 = vpop.f32.mrf.mxu0
      %1009 = vdwg.mxu0
      %v1010 = vsel %vm462, %v904, 0.0
      %v1011 = vrot.slane %v1010, 4
      %v1012 = vadd.f32 %v1010, %v1011
      %v1013 = vrot.slane %v1012, 2
      %v1014 = vadd.f32 %v1012, %v1013
      %v1015 = vrot.slane %v1014, 1
      %v1016 = vadd.f32 %v1014, %v1015
      %1017 = vst [vmem:[%s362] sm:$0xf] %v1007
      %1018 = vst.msk [vmem:[%s365] sm:$0x1] %vm372, %v1016
      %vm1019 = vcmp.eq.f32.partialorder %v889, %v894
      %v1020 = vcvt.s32.f32 %v377
      %v1021 = vsel %vm1019, %v1020, 4.0
      %v1022 = vsel %vm462, %v1021, inf
      %1023 = vmin.xlane.f32.xlu0 %v1022
      %v1024 = vpop.xlane.xlu0 %1023
      %v1025 = vcvt.s32.f32 %v807
      %vm1026 = vcmp.eq.f32.partialorder %v1024, %v1025
      %v1027 = vsel %vm1026, 1, 0
      %v1028 = vcvt.s32.f32 %v1027
      %vm1029 = vcmask 7168
      %v1030 = vsel %vm1029, %v1028, 0.0
      %v1031 = vrot.slane %v1030, 4
      %v1032 = vadd.f32 %v1030, %v1031
      %v1033 = vrot.slane %v1032, 2
      %v1034 = vadd.f32 %v1032, %v1033
      %v1035 = vrot.slane %v1034, 1
      %v1036 = vadd.f32 %v1034, %v1035
      %v1037 = vmul.f32 %v1036, 0.125
      %vm1038 = vcmask 0
      %1039 = vst.msk [vmem:[%s368] sm:$0x1] %vm1038, %v1037
      %p1040 = scmp.lt.s32.totalorder %s20, 1
      %s1041 = scalar_select %p1040, %s20, 1
      %s1042 = smul.addr %s1041, 4
      %s1043 = scalar_lea.vmem %s6, %s1042
      %p1044 = scmp.lt.s32.totalorder %s20, 1
      %s1045 = scalar_select %p1044, %s20, 1
      %s1046 = scalar_lea.vmem %s7, %s1045
      %p1047 = scmp.lt.s32.totalorder %s20, 1
      %s1048 = scalar_select %p1047, %s20, 1
      %s1049 = scalar_lea.vmem %s8, %s1048
      // Predicated region
      $region45: #{meta_learner_forward.1} parent=43 // pred_check
        %p1050 = pneg %p184
      $region46: #{meta_learner_forward.1} parent=43 // pred_check_branch
        %1052 = sbr.rel (%p1050) target = $region48
      $region47: #{meta_learner_forward.1} parent=43 // pred_region
        _
      $region48: #{meta_learner_forward.1} parent=43 // pred_fallthru
        _
      // Predicated region
      $region49: #{meta_learner_forward.1} parent=43 // pred_check
        %p1053 = pneg %p210
      $region50: #{meta_learner_forward.1} parent=43 // pred_check_branch
        %1055 = sbr.rel (%p1053) target = $region52
      $region51: #{meta_learner_forward.1} parent=43 // pred_region
        _
      $region52: #{meta_learner_forward.1} parent=43 // pred_fallthru
        _
      // Predicated region
      $region53: #{meta_learner_forward.1} parent=43 // pred_check
        %p1056 = pneg %p236
      $region54: #{meta_learner_forward.1} parent=43 // pred_check_branch
        %1058 = sbr.rel (%p1056) target = $region56
      $region55: #{meta_learner_forward.1} parent=43 // pred_region
        _
      $region56: #{meta_learner_forward.1} parent=43 // pred_fallthru
        _
    $region44: #{meta_learner_forward.1} parent=5 // pred_fallthru
      _
    %p1059 = scmp.le.s32.totalorder 2, %s15
    // Predicated region
    $region57: #{meta_learner_forward.1} parent=5 // pred_check
      %p1060 = pneg %p1059
    $region58: #{meta_learner_forward.1} parent=5 // pred_check_branch
      %1062 = sbr.rel (%p1060) target = $region60
    $region59: #{meta_learner_forward.1} parent=5 // pred_region
      %s1063 = ssub.s32 %s15, 2
      // Predicated region
      $region61: #{meta_learner_forward.1} parent=59 // pred_check
        %p1064 = pneg %p190
      $region62: #{meta_learner_forward.1} parent=59 // pred_check_branch
        %1066 = sbr.rel (%p1064) target = $region64
      $region63: #{meta_learner_forward.1} parent=59 // pred_region
        %p1067 = scmp.lt.s32.totalorder %s21, 1
        %s1068 = scalar_select %p1067, %s21, 1
        %s1069 = smul.addr %s1068, 4
        %s1070 = scalar_lea.vmem %s6, %s1069
      $region64: #{meta_learner_forward.1} parent=59 // pred_fallthru
        _
      // Predicated region
      $region65: #{meta_learner_forward.1} parent=59 // pred_check
        %p1071 = pneg %p216
      $region66: #{meta_learner_forward.1} parent=59 // pred_check_branch
        %1073 = sbr.rel (%p1071) target = $region68
      $region67: #{meta_learner_forward.1} parent=59 // pred_region
        %p1074 = scmp.lt.s32.totalorder %s21, 1
        %s1075 = scalar_select %p1074, %s21, 1
        %s1076 = scalar_lea.vmem %s7, %s1075
      $region68: #{meta_learner_forward.1} parent=59 // pred_fallthru
        _
      // Predicated region
      $region69: #{meta_learner_forward.1} parent=59 // pred_check
        %p1077 = pneg %p242
      $region70: #{meta_learner_forward.1} parent=59 // pred_check_branch
        %1079 = sbr.rel (%p1077) target = $region72
      $region71: #{meta_learner_forward.1} parent=59 // pred_region
        %p1080 = scmp.lt.s32.totalorder %s21, 1
        %s1081 = scalar_select %p1080, %s21, 1
        %s1082 = scalar_lea.vmem %s8, %s1081
      $region72: #{meta_learner_forward.1} parent=59 // pred_fallthru
        _
    $region60: #{meta_learner_forward.1} parent=5 // pred_fallthru
      _
  $region6: #{meta_learner_forward.1} parent=0 // loop_footer
    %s19 = sadd.s32 1, %s15
  $region7: #{meta_learner_forward.1} parent=0 // loop_footer_branch
    %14 = sbr.rel target = $region3
  $region8: #{meta_learner_forward.1} parent=0 // loop_exit
    _

</llo_original>
